<compile_context>
chip_gen: v7x
topology: tpu7x:2x2x1
jax: 0.10.0
libtpu: 0.0.40
codegen_flags: <defaults>
</compile_context>

<pallas_src>
import functools
import math

import jax
import jax.numpy as jnp
from jax import lax
from jax.experimental import pallas as pl
from jax.experimental.pallas import tpu as pltpu  # noqa: F401  (TPU backend)


def _mha_kernel(x_ref, wqkv_ref, w2_ref, b_ref, mask_ref, o_ref,
                *, num_heads, head_dim):
    H, C = num_heads, head_dim
    HC = H * C

    # Fused Q|K|V projection for all heads: one lane-dense bf16 MXU matmul,
    # (BT, C) @ (C, 3*H*C), f32 accumulation.
    qkv = jnp.dot(x_ref[...], wqkv_ref[...], preferred_element_type=jnp.float32)
    # Cast once so both attention matmuls below get bf16 operands (single MXU
    # pass per result instead of multi-pass f32xf32).
    qkv = qkv.astype(jnp.bfloat16)

    # Additive mask (0 allowed / -inf blocked): causal within a batch element,
    # -inf across batch elements (batch is folded into the sublane axis).
    mask = mask_ref[...]                              # (BT, BT) float32

    head_outs = []
    for h in range(H):                                # static unroll (H = 4)
        q = qkv[:, h * C:(h + 1) * C]
        k = qkv[:, HC + h * C:HC + (h + 1) * C]
        v = qkv[:, 2 * HC + h * C:2 * HC + (h + 1) * C]

        # q @ k^T contracting last dims (no explicit transpose through XLU);
        # the 1/sqrt(C) scale is pre-folded into the Q weight columns.
        s = lax.dot_general(q, k, (((1,), (1,)), ((), ())),
                            preferred_element_type=jnp.float32)
        s = s + mask

        # Softmax over keys in float32.  Every row has its diagonal unmasked,
        # so the row max is finite and the denominator is >= 1.
        m = jnp.max(s, axis=-1, keepdims=True)
        p = jnp.exp(s - m)
        inv_l = pl.reciprocal(jnp.sum(p, axis=-1, keepdims=True), approx=True)
        attn = (p * inv_l).astype(jnp.bfloat16)

        head_outs.append(jnp.dot(attn, v, preferred_element_type=jnp.float32))

    # Concatenate heads into a lane-dense (BT, H*C) = (16, 128) slab and run
    # the fused output projection (== concat-then-Linear) + bias.
    concat = jnp.concatenate(head_outs, axis=-1).astype(jnp.bfloat16)
    out = jnp.dot(concat, w2_ref[...], preferred_element_type=jnp.float32)
    out = out + b_ref[...]
    o_ref[...] = out.astype(o_ref.dtype)


def pack_mha_params(wq, wk, wv, w_lin, b_lin, *, context_size, batch,
                    compute_dtype=jnp.bfloat16):
    """One-time repacking of the PyTorch parameters (hoisted off the hot path).

    wq/wk/wv: (H, C, C) PyTorch Linear layout (out_features, in_features).
    w_lin:    (C, H*C) PyTorch layout.  b_lin: (C,).
    Returns (wqkv, w2, b2, mask) ready for the kernel.
    """
    H, C, _ = wq.shape
    HC = H * C
    scale = C ** (-0.5)

    # (H, C_out, C_in) -> (C_in, H*C_out) so that
    #   (x @ stacked)[:, h*C:(h+1)*C] == x @ w[h].T
    def _stack(w):
        return jnp.transpose(w, (2, 0, 1)).reshape(C, HC)

    wqkv = jnp.concatenate(
        [_stack(wq) * scale, _stack(wk), _stack(wv)], axis=-1
    ).astype(compute_dtype)                                   # (C, 3*H*C)

    w2 = jnp.transpose(w_lin, (1, 0)).astype(compute_dtype)   # (H*C, C)
    b2 = b_lin.reshape(1, C).astype(jnp.float32)              # (1, C)

    # Additive block mask for the folded (B*T, B*T) score matrix.
    BT = batch * context_size
    idx = jnp.arange(BT)
    row = idx[:, None]
    col = idx[None, :]
    same_batch = (row // context_size) == (col // context_size)
    causal = (col % context_size) <= (row % context_size)
    mask = jnp.where(same_batch & causal, 0.0, -jnp.inf).astype(jnp.float32)

    return wqkv, w2, b2, mask


def multi_attention_block(x, packed_params, *, num_heads,
                          compute_dtype=jnp.bfloat16):
    """x: (B, T, C).  packed_params: output of pack_mha_params."""
    wqkv, w2, b2, mask = packed_params
    B, T, C = x.shape
    BT = B * T

    x2d = x.reshape(BT, C).astype(compute_dtype)

    kernel = functools.partial(_mha_kernel, num_heads=num_heads, head_dim=C)

    # Single kernel invocation (no grid): every operand fits VMEM with huge
    # margin (wqkv 24 KiB bf16, w2 8 KiB, x/mask/out ~3 KiB), so a grid would
    # only add per-step pipeline overhead.
    out = pl.pallas_call(
        kernel,
        out_shape=jax.ShapeDtypeStruct((BT, C), jnp.float32),
    )(x2d, wqkv, w2, b2, mask)

    return out.reshape(B, T, C)


def _reference(x, wq, wk, wv, w_lin, b_lin):
    """Plain-JAX float32 replica of the PyTorch forward, for verification."""
    B, T, C = x.shape
    H = wq.shape[0]
    heads = []
    for h in range(H):
        q = x @ wq[h].T
        k = x @ wk[h].T
        v = x @ wv[h].T
        qk = (q @ jnp.swapaxes(k, -2, -1)) * (C ** (-0.5))
        m = jnp.tril(jnp.ones((T, T), jnp.float32))
        qk = jnp.where(m == 0, -jnp.inf, qk)
        attn = jax.nn.softmax(qk, axis=-1)
        heads.append(attn @ v)
    cat = jnp.concatenate(heads, axis=-1)          # (B, T, H*C)
    return cat @ w_lin.T + b_lin


if __name__ == "__main__":
    # Shapes consistent with the module: embedding_dim=32, num_heads=4,
    # context_size (=T) = 8, batch = 2.
    B, T, C, H = 2, 8, 32, 4

    key = jax.random.PRNGKey(0)
    kx, kq, kk, kv, kw, kb = jax.random.split(key, 6)

    x = jax.random.normal(kx, (B, T, C), dtype=jnp.float32)

    # PyTorch Linear-style init: uniform(-1/sqrt(fan_in), 1/sqrt(fan_in)).
    bound_qkv = 1.0 / math.sqrt(C)
    wq = jax.random.uniform(kq, (H, C, C), jnp.float32, -bound_qkv, bound_qkv)
    wk = jax.random.uniform(kk, (H, C, C), jnp.float32, -bound_qkv, bound_qkv)
    wv = jax.random.uniform(kv, (H, C, C), jnp.float32, -bound_qkv, bound_qkv)

    bound_lin = 1.0 / math.sqrt(C * H)
    w_lin = jax.random.uniform(kw, (C, H * C), jnp.float32, -bound_lin, bound_lin)
    b_lin = jax.random.uniform(kb, (C,), jnp.float32, -bound_lin, bound_lin)

    # One-time parameter packing (kept off the per-call hot path).
    packed = pack_mha_params(wq, wk, wv, w_lin, b_lin,
                             context_size=T, batch=B)
    packed = jax.block_until_ready(packed)

    out = multi_attention_block(x, packed, num_heads=H)
    out = jax.block_until_ready(out)

    ref = _reference(x, wq, wk, wv, w_lin, b_lin)
    assert out.shape == (B, T, C)
    # Tolerance reflects bf16 MXU operands (f32 accumulation) and the approx
    # reciprocal in the softmax denominator vs the f32 reference.
    assert jnp.allclose(out, ref, atol=2e-2, rtol=2e-2), "mismatch vs reference"

    print("KERNEL_OK")
</pallas_src>

<mosaic_0001>
module attributes {stable_mosaic.version = 11 : i64} {
  func.func @_mha_kernel(%arg0: memref<16x32xbf16, #tpu.memory_space<vmem>>, %arg1: memref<32x384xbf16, #tpu.memory_space<vmem>>, %arg2: memref<128x32xbf16, #tpu.memory_space<vmem>>, %arg3: memref<1x32xf32, #tpu.memory_space<vmem>>, %arg4: memref<16x16xf32, #tpu.memory_space<vmem>>, %arg5: memref<16x32xf32, #tpu.memory_space<vmem>>) attributes {dimension_semantics = [], scalar_prefetch = 0 : i64, scratch_operands = 0 : i64, tpu.core_type = #tpu.core_type<tc>} {
    %c0 = arith.constant 0 : index
    %c0_0 = arith.constant 0 : index
    %0 = vector.load %arg0[%c0, %c0_0] : memref<16x32xbf16, #tpu.memory_space<vmem>>, vector<16x32xbf16>
    %c0_1 = arith.constant 0 : index
    %c0_2 = arith.constant 0 : index
    %1 = vector.load %arg1[%c0_1, %c0_2] : memref<32x384xbf16, #tpu.memory_space<vmem>>, vector<32x384xbf16>
    %cst = arith.constant dense<0.000000e+00> : vector<16x384xf32>
    %2 = tpu.matmul %0, %1, %cst {dimension_numbers = #tpu.dot_dimension_numbers<[1], [0], [0], [1], [0, 0, 1, 1], [], []>} : vector<16x32xbf16>, vector<32x384xbf16>, vector<16x384xf32> -> vector<16x384xf32>
    %3 = arith.truncf %2 : vector<16x384xf32> to vector<16x384xbf16>
    %c0_3 = arith.constant 0 : index
    %c0_4 = arith.constant 0 : index
    %4 = vector.load %arg4[%c0_3, %c0_4] : memref<16x16xf32, #tpu.memory_space<vmem>>, vector<16x16xf32>
    %5 = vector.extract_strided_slice %3 {offsets = [0, 0], sizes = [16, 32], strides = [1, 1]} : vector<16x384xbf16> to vector<16x32xbf16>
    %6 = vector.extract_strided_slice %3 {offsets = [0, 128], sizes = [16, 32], strides = [1, 1]} : vector<16x384xbf16> to vector<16x32xbf16>
    %7 = vector.extract_strided_slice %3 {offsets = [0, 256], sizes = [16, 32], strides = [1, 1]} : vector<16x384xbf16> to vector<16x32xbf16>
    %cst_5 = arith.constant dense<0.000000e+00> : vector<16x16xf32>
    %8 = tpu.matmul %5, %6, %cst_5 {dimension_numbers = #tpu.dot_dimension_numbers<[1], [1], [0], [0], [0, 0, 1, 0], [], []>} : vector<16x32xbf16>, vector<16x32xbf16>, vector<16x16xf32> -> vector<16x16xf32>
    %9 = arith.addf %8, %4 : vector<16x16xf32>
    %cst_6 = arith.constant dense<0xFF800000> : vector<16xf32>
    %10 = vector.multi_reduction <maximumf>, %9, %cst_6 [1] : vector<16x16xf32> to vector<16xf32>
    %11 = vector.shape_cast %10 : vector<16xf32> to vector<16x1xf32>
    %12 = vector.broadcast %11 : vector<16x1xf32> to vector<16x16xf32>
    %13 = arith.subf %9, %12 : vector<16x16xf32>
    %14 = math.exp %13 : vector<16x16xf32>
    %cst_7 = arith.constant dense<0.000000e+00> : vector<16xf32>
    %15 = vector.multi_reduction <add>, %14, %cst_7 [1] : vector<16x16xf32> to vector<16xf32>
    %16 = vector.shape_cast %15 : vector<16xf32> to vector<16x1xf32>
    %17 = tpu.reciprocal %16 {approx = true} : vector<16x1xf32> -> vector<16x1xf32>
    %18 = vector.broadcast %17 : vector<16x1xf32> to vector<16x16xf32>
    %19 = arith.mulf %14, %18 : vector<16x16xf32>
    %20 = arith.truncf %19 : vector<16x16xf32> to vector<16x16xbf16>
    %cst_8 = arith.constant dense<0.000000e+00> : vector<16x32xf32>
    %21 = tpu.matmul %20, %7, %cst_8 {dimension_numbers = #tpu.dot_dimension_numbers<[1], [0], [0], [1], [0, 0, 1, 1], [], []>} : vector<16x16xbf16>, vector<16x32xbf16>, vector<16x32xf32> -> vector<16x32xf32>
    %22 = vector.extract_strided_slice %3 {offsets = [0, 32], sizes = [16, 32], strides = [1, 1]} : vector<16x384xbf16> to vector<16x32xbf16>
    %23 = vector.extract_strided_slice %3 {offsets = [0, 160], sizes = [16, 32], strides = [1, 1]} : vector<16x384xbf16> to vector<16x32xbf16>
    %24 = vector.extract_strided_slice %3 {offsets = [0, 288], sizes = [16, 32], strides = [1, 1]} : vector<16x384xbf16> to vector<16x32xbf16>
    %cst_9 = arith.constant dense<0.000000e+00> : vector<16x16xf32>
    %25 = tpu.matmul %22, %23, %cst_9 {dimension_numbers = #tpu.dot_dimension_numbers<[1], [1], [0], [0], [0, 0, 1, 0], [], []>} : vector<16x32xbf16>, vector<16x32xbf16>, vector<16x16xf32> -> vector<16x16xf32>
    %26 = arith.addf %25, %4 : vector<16x16xf32>
    %cst_10 = arith.constant dense<0xFF800000> : vector<16xf32>
    %27 = vector.multi_reduction <maximumf>, %26, %cst_10 [1] : vector<16x16xf32> to vector<16xf32>
    %28 = vector.shape_cast %27 : vector<16xf32> to vector<16x1xf32>
    %29 = vector.broadcast %28 : vector<16x1xf32> to vector<16x16xf32>
    %30 = arith.subf %26, %29 : vector<16x16xf32>
    %31 = math.exp %30 : vector<16x16xf32>
    %cst_11 = arith.constant dense<0.000000e+00> : vector<16xf32>
    %32 = vector.multi_reduction <add>, %31, %cst_11 [1] : vector<16x16xf32> to vector<16xf32>
    %33 = vector.shape_cast %32 : vector<16xf32> to vector<16x1xf32>
    %34 = tpu.reciprocal %33 {approx = true} : vector<16x1xf32> -> vector<16x1xf32>
    %35 = vector.broadcast %34 : vector<16x1xf32> to vector<16x16xf32>
    %36 = arith.mulf %31, %35 : vector<16x16xf32>
    %37 = arith.truncf %36 : vector<16x16xf32> to vector<16x16xbf16>
    %cst_12 = arith.constant dense<0.000000e+00> : vector<16x32xf32>
    %38 = tpu.matmul %37, %24, %cst_12 {dimension_numbers = #tpu.dot_dimension_numbers<[1], [0], [0], [1], [0, 0, 1, 1], [], []>} : vector<16x16xbf16>, vector<16x32xbf16>, vector<16x32xf32> -> vector<16x32xf32>
    %39 = vector.extract_strided_slice %3 {offsets = [0, 64], sizes = [16, 32], strides = [1, 1]} : vector<16x384xbf16> to vector<16x32xbf16>
    %40 = vector.extract_strided_slice %3 {offsets = [0, 192], sizes = [16, 32], strides = [1, 1]} : vector<16x384xbf16> to vector<16x32xbf16>
    %41 = vector.extract_strided_slice %3 {offsets = [0, 320], sizes = [16, 32], strides = [1, 1]} : vector<16x384xbf16> to vector<16x32xbf16>
    %cst_13 = arith.constant dense<0.000000e+00> : vector<16x16xf32>
    %42 = tpu.matmul %39, %40, %cst_13 {dimension_numbers = #tpu.dot_dimension_numbers<[1], [1], [0], [0], [0, 0, 1, 0], [], []>} : vector<16x32xbf16>, vector<16x32xbf16>, vector<16x16xf32> -> vector<16x16xf32>
    %43 = arith.addf %42, %4 : vector<16x16xf32>
    %cst_14 = arith.constant dense<0xFF800000> : vector<16xf32>
    %44 = vector.multi_reduction <maximumf>, %43, %cst_14 [1] : vector<16x16xf32> to vector<16xf32>
    %45 = vector.shape_cast %44 : vector<16xf32> to vector<16x1xf32>
    %46 = vector.broadcast %45 : vector<16x1xf32> to vector<16x16xf32>
    %47 = arith.subf %43, %46 : vector<16x16xf32>
    %48 = math.exp %47 : vector<16x16xf32>
    %cst_15 = arith.constant dense<0.000000e+00> : vector<16xf32>
    %49 = vector.multi_reduction <add>, %48, %cst_15 [1] : vector<16x16xf32> to vector<16xf32>
    %50 = vector.shape_cast %49 : vector<16xf32> to vector<16x1xf32>
    %51 = tpu.reciprocal %50 {approx = true} : vector<16x1xf32> -> vector<16x1xf32>
    %52 = vector.broadcast %51 : vector<16x1xf32> to vector<16x16xf32>
    %53 = arith.mulf %48, %52 : vector<16x16xf32>
    %54 = arith.truncf %53 : vector<16x16xf32> to vector<16x16xbf16>
    %cst_16 = arith.constant dense<0.000000e+00> : vector<16x32xf32>
    %55 = tpu.matmul %54, %41, %cst_16 {dimension_numbers = #tpu.dot_dimension_numbers<[1], [0], [0], [1], [0, 0, 1, 1], [], []>} : vector<16x16xbf16>, vector<16x32xbf16>, vector<16x32xf32> -> vector<16x32xf32>
    %56 = vector.extract_strided_slice %3 {offsets = [0, 96], sizes = [16, 32], strides = [1, 1]} : vector<16x384xbf16> to vector<16x32xbf16>
    %57 = vector.extract_strided_slice %3 {offsets = [0, 224], sizes = [16, 32], strides = [1, 1]} : vector<16x384xbf16> to vector<16x32xbf16>
    %58 = vector.extract_strided_slice %3 {offsets = [0, 352], sizes = [16, 32], strides = [1, 1]} : vector<16x384xbf16> to vector<16x32xbf16>
    %cst_17 = arith.constant dense<0.000000e+00> : vector<16x16xf32>
    %59 = tpu.matmul %56, %57, %cst_17 {dimension_numbers = #tpu.dot_dimension_numbers<[1], [1], [0], [0], [0, 0, 1, 0], [], []>} : vector<16x32xbf16>, vector<16x32xbf16>, vector<16x16xf32> -> vector<16x16xf32>
    %60 = arith.addf %59, %4 : vector<16x16xf32>
    %cst_18 = arith.constant dense<0xFF800000> : vector<16xf32>
    %61 = vector.multi_reduction <maximumf>, %60, %cst_18 [1] : vector<16x16xf32> to vector<16xf32>
    %62 = vector.shape_cast %61 : vector<16xf32> to vector<16x1xf32>
    %63 = vector.broadcast %62 : vector<16x1xf32> to vector<16x16xf32>
    %64 = arith.subf %60, %63 : vector<16x16xf32>
    %65 = math.exp %64 : vector<16x16xf32>
    %cst_19 = arith.constant dense<0.000000e+00> : vector<16xf32>
    %66 = vector.multi_reduction <add>, %65, %cst_19 [1] : vector<16x16xf32> to vector<16xf32>
    %67 = vector.shape_cast %66 : vector<16xf32> to vector<16x1xf32>
    %68 = tpu.reciprocal %67 {approx = true} : vector<16x1xf32> -> vector<16x1xf32>
    %69 = vector.broadcast %68 : vector<16x1xf32> to vector<16x16xf32>
    %70 = arith.mulf %65, %69 : vector<16x16xf32>
    %71 = arith.truncf %70 : vector<16x16xf32> to vector<16x16xbf16>
    %cst_20 = arith.constant dense<0.000000e+00> : vector<16x32xf32>
    %72 = tpu.matmul %71, %58, %cst_20 {dimension_numbers = #tpu.dot_dimension_numbers<[1], [0], [0], [1], [0, 0, 1, 1], [], []>} : vector<16x16xbf16>, vector<16x32xbf16>, vector<16x32xf32> -> vector<16x32xf32>
    %73 = tpu.concatenate %21, %38, %55, %72 in 1 : vector<16x32xf32>, vector<16x32xf32>, vector<16x32xf32>, vector<16x32xf32> -> vector<16x128xf32>
    %74 = arith.truncf %73 : vector<16x128xf32> to vector<16x128xbf16>
    %c0_21 = arith.constant 0 : index
    %c0_22 = arith.constant 0 : index
    %75 = vector.load %arg2[%c0_21, %c0_22] : memref<128x32xbf16, #tpu.memory_space<vmem>>, vector<128x32xbf16>
    %cst_23 = arith.constant dense<0.000000e+00> : vector<16x32xf32>
    %76 = tpu.matmul %74, %75, %cst_23 {dimension_numbers = #tpu.dot_dimension_numbers<[1], [0], [0], [1], [0, 0, 1, 1], [], []>} : vector<16x128xbf16>, vector<128x32xbf16>, vector<16x32xf32> -> vector<16x32xf32>
    %c0_24 = arith.constant 0 : index
    %c0_25 = arith.constant 0 : index
    %77 = vector.load %arg3[%c0_24, %c0_25] : memref<1x32xf32, #tpu.memory_space<vmem>>, vector<1x32xf32>
    %78 = vector.broadcast %77 : vector<1x32xf32> to vector<16x32xf32>
    %79 = arith.addf %76, %78 : vector<16x32xf32>
    %c0_26 = arith.constant 0 : index
    %c0_27 = arith.constant 0 : index
    %80 = vector.load %arg5[%c0_26, %c0_27] : memref<16x32xf32, #tpu.memory_space<vmem>>, vector<16x32xf32>
    tpu.vector_store %arg5[%c0_26, %c0_27], %79 {strides = array<i32>} : memref<16x32xf32, #tpu.memory_space<vmem>>, vector<16x32xf32>,
    return
  }
}

</mosaic_0001>

<llo_original>
// kernel: tpu_custom_call.1
$region0: #{tpu_custom_call.1}
  #allocation0 [shape = 'u32[]', space=smem, size = 0x4, offset = 0x4, fixed_abs, tag = 'smem constant byte address 0x4 - core index']
  #allocation1 [shape = 'u32[144,128]{1,0:T(1,128)}', space=vmem, size = 0x12000, scoped, tag = 'internal scratch']
  %s0 = inlined_call_operand.vmem [shape: bf16[16,32], index: 0, kind: input, shape index: {}]
  %s1 = inlined_call_operand.vmem [shape: bf16[32,384], index: 1, kind: input, shape index: {}]
  %s2 = inlined_call_operand.vmem [shape: bf16[128,32], index: 2, kind: input, shape index: {}]
  %s3 = inlined_call_operand.vmem [shape: f32[1,32], index: 3, kind: input, shape index: {}]
  %s4 = inlined_call_operand.vmem [shape: f32[16,16], index: 4, kind: input, shape index: {}]
  %s5 = inlined_call_operand.hbm [shape: f32[16,32], index: 5, kind: output, shape index: {}]
  %s6 = sld [smem:[#allocation0]]
  $region30: #{tpu_custom_call.1} parent=0
    _
  %s8 = ssub.s32 1, %s6
  %s9 = scalar_select 0, %s8, %s6
  $region1: #{tpu_custom_call.1} parent=0
    #allocation2 [shape = 'u8[8192]{0}', space=vmem, size = 0x2000, scoped, tag = 'output window, operand 0, single buffered']
    #allocation3 [shape = 's32[1]{0}', space=sflag, size = 0x4, scoped, tag = 'scoped memory for tpu_custom_call.1']
    %10 = vsyncpa [#allocation3], 0
    // Predicated region
    $region2: #{tpu_custom_call.1} parent=1 // pred_check
      _
    $region3: #{tpu_custom_call.1} parent=1 // pred_check_branch
      %12 = sbr.rel (0) target = $region5
    $region4: #{tpu_custom_call.1} parent=1 // pred_region
      _
    $region5: #{tpu_custom_call.1} parent=1 // pred_fallthru
      _
    // Predicated region
    $region6: #{tpu_custom_call.1} parent=1 // pred_check
      _
    $region7: #{tpu_custom_call.1} parent=1 // pred_check_branch
      %14 = sbr.rel (0) target = $region9
    $region8: #{tpu_custom_call.1} parent=1 // pred_region
      _
    $region9: #{tpu_custom_call.1} parent=1 // pred_fallthru
      _
    // Predicated region
    $region10: #{tpu_custom_call.1} parent=1 // pred_check
      _
    $region11: #{tpu_custom_call.1} parent=1 // pred_check_branch
      %16 = sbr.rel (0) target = $region13
    $region12: #{tpu_custom_call.1} parent=1 // pred_region
      _
    $region13: #{tpu_custom_call.1} parent=1 // pred_fallthru
      _
    // Predicated region
    $region14: #{tpu_custom_call.1} parent=1 // pred_check
      _
    $region15: #{tpu_custom_call.1} parent=1 // pred_check_branch
      %18 = sbr.rel (0) target = $region17
    $region16: #{tpu_custom_call.1} parent=1 // pred_region
      _
    $region17: #{tpu_custom_call.1} parent=1 // pred_fallthru
      _
    // Predicated region
    $region18: #{tpu_custom_call.1} parent=1 // pred_check
      _
    $region19: #{tpu_custom_call.1} parent=1 // pred_check_branch
      %20 = sbr.rel (0) target = $region21
    $region20: #{tpu_custom_call.1} parent=1 // pred_region
      _
    $region21: #{tpu_custom_call.1} parent=1 // pred_fallthru
      _
    %v22 = vld [vmem:[%s0] sm:$0xf]
    %v23 = vld [vmem:[%s0 + $0x4] sm:$0xf]
    %v24 = vld [vmem:[%s1] sm:$0xff]
    %v25 = vld [vmem:[%s1 + $0x8] sm:$0xf]
    %v26 = vld [vmem:[%s1 + $0xc] sm:$0xff]
    %v27 = vld [vmem:[%s1 + $0x14] sm:$0xf]
    %v28 = vld [vmem:[%s1 + $0x18] sm:$0xff]
    %v29 = vld [vmem:[%s1 + $0x20] sm:$0xf]
    %v30 = vld [vmem:[%s1 + $0x24] sm:$0xff]
    %v31 = vld [vmem:[%s1 + $0x2c] sm:$0xf]
    %v34 = vunpack.c.l.b16 %v22
    %v35 = vunpack.c.l.b16 %v23
    %v36 = vpack.c.b16 %v35, %v34
    %v45 = vunpack.c.l.b16 %v24
    %v46 = vunpack.c.h.b16 %v24
    %v47 = vunpack.c.l.b16 %v25
    %v48 = vunpack.c.l.b16 %v26
    %v49 = vunpack.c.h.b16 %v26
    %v50 = vunpack.c.l.b16 %v27
    %v51 = vunpack.c.l.b16 %v28
    %v52 = vunpack.c.h.b16 %v28
    %v53 = vunpack.c.l.b16 %v29
    %v54 = vunpack.c.l.b16 %v30
    %v55 = vunpack.c.h.b16 %v30
    %v56 = vunpack.c.l.b16 %v31
    %v57 = vpack.c.b16 %v48, %v45
    %v58 = vpack.c.b16 %v49, %v46
    %v59 = vpack.c.b16 %v50, %v47
    %v60 = vpack.c.b16 %v54, %v51
    %v61 = vpack.c.b16 %v55, %v52
    %v62 = vpack.c.b16 %v56, %v53
    %vm69 = vcmask 261120
    %v71 = vsel %vm69, %v36, 0
    %73 = vmatprep.subr.bf16.mxu0 %v58
    %74 = vmatpush1.bf16.msra.mxu0 %v57
    %75 = vmatprep.subr.bf16.mxu0 %v61
    %76 = vmatpush1.bf16.msra.mxu0 %v60
    %77 = vmatprep.subr.bf16.mxu0 0
    %78 = vmatpush1.bf16.msra.mxu0 0
    %79 = vmatprep.subr.bf16.mxu0 0
    %80 = vmatpush1.bf16.msra.mxu0 0
    %81 = vmatprep.subr.bf16.mxu0 0
    %82 = vmatpush1.bf16.msra.mxu0 0
    %83 = vmatprep.subr.bf16.mxu0 0
    %84 = vmatpush1.bf16.msra.mxu0 0
    %85 = vmatprep.subr.bf16.mxu0 0
    %86 = vmatpush1.bf16.msra.mxu0 0
    %87 = vmatprep.subr.bf16.mxu0 0
    %88 = vmatpush1.bf16.msra.mxu0 0
    %89 = vmatprep.subr.bf16.mxu0 0
    %90 = vmatpush1.bf16.msra.mxu0 0
    %91 = vmatprep.subr.bf16.mxu0 0
    %92 = vmatpush1.bf16.msra.mxu0 0
    %93 = vmatprep.subr.bf16.mxu0 0
    %94 = vmatpush1.bf16.msra.mxu0 0
    %95 = vmatprep.subr.bf16.mxu0 0
    %96 = vmatpush1.bf16.msra.mxu0 0
    %97 = vmatprep.subr.bf16.mxu0 0
    %98 = vmatpush1.bf16.msra.mxu0 0
    %99 = vmatprep.subr.bf16.mxu0 0
    %100 = vmatpush1.bf16.msra.mxu0 0
    %101 = vmatprep.subr.bf16.mxu0 0
    %102 = vmatpush1.bf16.msra.mxu0 0
    %103 = vmatprep.subr.bf16.mxu0 0
    %104 = vmatpush1.bf16.msra.mxu0 0
    %105 = vmatprep.mubr.bf16.mxu0 0
    %106 = vmatmul.mubr.bf16.gmra.mrb[0].mxu0 %v71
    %v107 = vpop.f32.mrb[0].mxu0
    %v108 = vadd.f32 0.0, %v107
    %v109 = vpop.f32.mrb[0].mxu0
    %v110 = vadd.f32 0.0, %v109
    %v111 = vpop.f32.mrb[0].mxu0
    %v112 = vadd.f32 0.0, %v111
    %v113 = vpop.f32.mrb[0].mxu0
    %v114 = vadd.f32 0.0, %v113
    %115 = vdwg.mxu0
    %116 = vmatprep.subr.bf16.mxu0 0
    %117 = vmatpush1.bf16.msra.mxu0 %v59
    %118 = vmatprep.subr.bf16.mxu0 0
    %119 = vmatpush1.bf16.msra.mxu0 %v62
    %120 = vmatprep.subr.bf16.mxu0 0
    %121 = vmatpush1.bf16.msra.mxu0 0
    %122 = vmatprep.subr.bf16.mxu0 0
    %123 = vmatpush1.bf16.msra.mxu0 0
    %124 = vmatprep.subr.bf16.mxu0 0
    %125 = vmatpush1.bf16.msra.mxu0 0
    %126 = vmatprep.subr.bf16.mxu0 0
    %127 = vmatpush1.bf16.msra.mxu0 0
    %128 = vmatprep.subr.bf16.mxu0 0
    %129 = vmatpush1.bf16.msra.mxu0 0
    %130 = vmatprep.subr.bf16.mxu0 0
    %131 = vmatpush1.bf16.msra.mxu0 0
    %132 = vmatprep.subr.bf16.mxu0 0
    %133 = vmatpush1.bf16.msra.mxu0 0
    %134 = vmatprep.subr.bf16.mxu0 0
    %135 = vmatpush1.bf16.msra.mxu0 0
    %136 = vmatprep.subr.bf16.mxu0 0
    %137 = vmatpush1.bf16.msra.mxu0 0
    %138 = vmatprep.subr.bf16.mxu0 0
    %139 = vmatpush1.bf16.msra.mxu0 0
    %140 = vmatprep.subr.bf16.mxu0 0
    %141 = vmatpush1.bf16.msra.mxu0 0
    %142 = vmatprep.subr.bf16.mxu0 0
    %143 = vmatpush1.bf16.msra.mxu0 0
    %144 = vmatprep.subr.bf16.mxu0 0
    %145 = vmatpush1.bf16.msra.mxu0 0
    %146 = vmatprep.subr.bf16.mxu0 0
    %147 = vmatpush1.bf16.msra.mxu0 0
    %148 = vmatprep.mubr.bf16.mxu0 0
    %149 = vmatmul.mubr.bf16.gmra.mrb[0].mxu0 %v71
    %v150 = vpop.f32.mrb[0].mxu0
    %v151 = vadd.f32 0.0, %v150
    %v152 = vpop.f32.mrb[0].mxu0
    %v153 = vpop.f32.mrb[0].mxu0
    %v154 = vadd.f32 0.0, %v153
    %v155 = vpop.f32.mrb[0].mxu0
    %156 = vdwg.mxu0
    %v157 = vpack.c.bf16 %v112, %v108
    %v158 = vpack.c.bf16 %v114, %v110
    %v159 = vpack.c.bf16 %v154, %v151
    %v160 = vld [vmem:[%s4] sm:$0xff]
    %v161 = vld [vmem:[%s4 + $0x8] sm:$0xff]
    %v163 = vsel %vm69, %v157, 0
    %v166 = vsel %vm69, %v158, 0
    %168 = vmatprep.subr.bf16.mxu0 0
    %169 = vmatpush1.bf16.xpose.msra.mxu0 %v166
    %170 = vmatprep.subr.bf16.mxu0 0
    %171 = vmatpush1.bf16.xpose.msra.mxu0 0
    %172 = vmatprep.subr.bf16.mxu0 0
    %173 = vmatpush1.bf16.xpose.msra.mxu0 0
    %174 = vmatprep.subr.bf16.mxu0 0
    %175 = vmatpush1.bf16.xpose.msra.mxu0 0
    %176 = vmatprep.subr.bf16.mxu0 0
    %177 = vmatpush1.bf16.xpose.msra.mxu0 0
    %178 = vmatprep.subr.bf16.mxu0 0
    %179 = vmatpush1.bf16.xpose.msra.mxu0 0
    %180 = vmatprep.subr.bf16.mxu0 0
    %181 = vmatpush1.bf16.xpose.msra.mxu0 0
    %182 = vmatprep.subr.bf16.mxu0 0
    %183 = vmatpush1.bf16.xpose.msra.mxu0 0
    %184 = vmatprep.subr.bf16.mxu0 0
    %185 = vmatpush1.bf16.xpose.msra.mxu0 0
    %186 = vmatprep.subr.bf16.mxu0 0
    %187 = vmatpush1.bf16.xpose.msra.mxu0 0
    %188 = vmatprep.subr.bf16.mxu0 0
    %189 = vmatpush1.bf16.xpose.msra.mxu0 0
    %190 = vmatprep.subr.bf16.mxu0 0
    %191 = vmatpush1.bf16.xpose.msra.mxu0 0
    %192 = vmatprep.subr.bf16.mxu0 0
    %193 = vmatpush1.bf16.xpose.msra.mxu0 0
    %194 = vmatprep.subr.bf16.mxu0 0
    %195 = vmatpush1.bf16.xpose.msra.mxu0 0
    %196 = vmatprep.subr.bf16.mxu0 0
    %197 = vmatpush1.bf16.xpose.msra.mxu0 0
    %198 = vmatprep.subr.bf16.mxu0 0
    %199 = vmatpush1.bf16.xpose.msra.mxu0 0
    %200 = vmatprep.mubr.bf16.mxu0 0
    %201 = vmatmul.mubr.bf16.gmra.mrb[0].mxu0 %v163
    %v202 = vpop.f32.mrb[0].mxu0
    %v203 = vadd.f32 %v160, %v202
    %v204 = vpop.f32.mrb[0].mxu0
    %v205 = vpop.f32.mrb[0].mxu0
    %v206 = vadd.f32 %v161, %v205
    %v207 = vpop.f32.mrb[0].mxu0
    %208 = vdwg.mxu0
    %vm209 = vcmask 130048
    %v210 = vsel %vm209, %v203, -inf
    %211 = vmax.xlane.f32.xlu0 %v210
    %v212 = vpop.xlane.xlu0 %211
    %v213 = vsel %vm209, %v206, -inf
    %214 = vmax.xlane.f32.xlu0 %v213
    %v215 = vpop.xlane.xlu0 %214
    %v216 = vsub.f32 %v203, %v212
    %v217 = vsub.f32 %v206, %v215
    %v218 = vmul.f32 %v216, 1.442695
    %v219 = vpow.pop %v218
    %v220 = vmul.f32 %v217, 1.442695
    %v221 = vpow.pop %v220
    %v222 = vsel %vm209, %v219, 0.0
    %223 = vadd.xlane.f32.xlu0 %v222
    %v224 = vpop.xlane.xlu0 %223
    %v225 = vsel %vm209, %v221, 0.0
    %226 = vadd.xlane.f32.xlu0 %v225
    %v227 = vpop.xlane.xlu0 %226
    %v228 = vrcp.pop %v224
    %v229 = vrcp.pop %v227
    %v230 = vmul.f32 %v219, %v228
    %v231 = vmul.f32 %v221, %v229
    %v232 = vpack.c.bf16 %v231, %v230
    %v234 = vsel %vm209, %v232, 0
    %236 = vmatprep.subr.bf16.mxu0 0
    %237 = vmatpush1.bf16.msra.mxu0 %v159
    %238 = vmatprep.subr.bf16.mxu0 0
    %239 = vmatpush1.bf16.msra.mxu0 0
    %240 = vmatprep.subr.bf16.mxu0 0
    %241 = vmatpush1.bf16.msra.mxu0 0
    %242 = vmatprep.subr.bf16.mxu0 0
    %243 = vmatpush1.bf16.msra.mxu0 0
    %244 = vmatprep.subr.bf16.mxu0 0
    %245 = vmatpush1.bf16.msra.mxu0 0
    %246 = vmatprep.subr.bf16.mxu0 0
    %247 = vmatpush1.bf16.msra.mxu0 0
    %248 = vmatprep.subr.bf16.mxu0 0
    %249 = vmatpush1.bf16.msra.mxu0 0
    %250 = vmatprep.subr.bf16.mxu0 0
    %251 = vmatpush1.bf16.msra.mxu0 0
    %252 = vmatprep.subr.bf16.mxu0 0
    %253 = vmatpush1.bf16.msra.mxu0 0
    %254 = vmatprep.subr.bf16.mxu0 0
    %255 = vmatpush1.bf16.msra.mxu0 0
    %256 = vmatprep.subr.bf16.mxu0 0
    %257 = vmatpush1.bf16.msra.mxu0 0
    %258 = vmatprep.subr.bf16.mxu0 0
    %259 = vmatpush1.bf16.msra.mxu0 0
    %260 = vmatprep.subr.bf16.mxu0 0
    %261 = vmatpush1.bf16.msra.mxu0 0
    %262 = vmatprep.subr.bf16.mxu0 0
    %263 = vmatpush1.bf16.msra.mxu0 0
    %264 = vmatprep.subr.bf16.mxu0 0
    %265 = vmatpush1.bf16.msra.mxu0 0
    %266 = vmatprep.subr.bf16.mxu0 0
    %267 = vmatpush1.bf16.msra.mxu0 0
    %268 = vmatprep.mubr.bf16.mxu0 0
    %269 = vmatmul.mubr.bf16.gmra.mrb[0].mxu0 %v234
    %v270 = vpop.f32.mrb[0].mxu0
    %v271 = vadd.f32 0.0, %v270
    %v272 = vpop.f32.mrb[0].mxu0
    %v273 = vpop.f32.mrb[0].mxu0
    %v274 = vadd.f32 0.0, %v273
    %v275 = vpop.f32.mrb[0].mxu0
    %276 = vdwg.mxu0
    %278 = vrot.lane.b32.xlu0 %v157, 96
    %v279 = vpop.permute.xlu0 %278
    %281 = vrot.lane.b32.xlu0 %v158, 96
    %v282 = vpop.permute.xlu0 %281
    %v284 = vsel %vm69, %v279, 0
    %v287 = vsel %vm69, %v282, 0
    %289 = vmatprep.subr.bf16.mxu0 0
    %290 = vmatpush1.bf16.xpose.msra.mxu0 %v287
    %291 = vmatprep.subr.bf16.mxu0 0
    %292 = vmatpush1.bf16.xpose.msra.mxu0 0
    %293 = vmatprep.subr.bf16.mxu0 0
    %294 = vmatpush1.bf16.xpose.msra.mxu0 0
    %295 = vmatprep.subr.bf16.mxu0 0
    %296 = vmatpush1.bf16.xpose.msra.mxu0 0
    %297 = vmatprep.subr.bf16.mxu0 0
    %298 = vmatpush1.bf16.xpose.msra.mxu0 0
    %299 = vmatprep.subr.bf16.mxu0 0
    %300 = vmatpush1.bf16.xpose.msra.mxu0 0
    %301 = vmatprep.subr.bf16.mxu0 0
    %302 = vmatpush1.bf16.xpose.msra.mxu0 0
    %303 = vmatprep.subr.bf16.mxu0 0
    %304 = vmatpush1.bf16.xpose.msra.mxu0 0
    %305 = vmatprep.subr.bf16.mxu0 0
    %306 = vmatpush1.bf16.xpose.msra.mxu0 0
    %307 = vmatprep.subr.bf16.mxu0 0
    %308 = vmatpush1.bf16.xpose.msra.mxu0 0
    %309 = vmatprep.subr.bf16.mxu0 0
    %310 = vmatpush1.bf16.xpose.msra.mxu0 0
    %311 = vmatprep.subr.bf16.mxu0 0
    %312 = vmatpush1.bf16.xpose.msra.mxu0 0
    %313 = vmatprep.subr.bf16.mxu0 0
    %314 = vmatpush1.bf16.xpose.msra.mxu0 0
    %315 = vmatprep.subr.bf16.mxu0 0
    %316 = vmatpush1.bf16.xpose.msra.mxu0 0
    %317 = vmatprep.subr.bf16.mxu0 0
    %318 = vmatpush1.bf16.xpose.msra.mxu0 0
    %319 = vmatprep.subr.bf16.mxu0 0
    %320 = vmatpush1.bf16.xpose.msra.mxu0 0
    %321 = vmatprep.mubr.bf16.mxu0 0
    %322 = vmatmul.mubr.bf16.gmra.mrb[0].mxu0 %v284
    %v323 = vpop.f32.mrb[0].mxu0
    %v324 = vadd.f32 %v160, %v323
    %v325 = vpop.f32.mrb[0].mxu0
    %v326 = vpop.f32.mrb[0].mxu0
    %v327 = vadd.f32 %v161, %v326
    %v328 = vpop.f32.mrb[0].mxu0
    %329 = vdwg.mxu0
    %v330 = vsel %vm209, %v324, -inf
    %331 = vmax.xlane.f32.xlu0 %v330
    %v332 = vpop.xlane.xlu0 %331
    %v333 = vsel %vm209, %v327, -inf
    %334 = vmax.xlane.f32.xlu0 %v333
    %v335 = vpop.xlane.xlu0 %334
    %v336 = vsub.f32 %v324, %v332
    %v337 = vsub.f32 %v327, %v335
    %v338 = vmul.f32 %v336, 1.442695
    %v339 = vpow.pop %v338
    %v340 = vmul.f32 %v337, 1.442695
    %v341 = vpow.pop %v340
    %v342 = vsel %vm209, %v339, 0.0
    %343 = vadd.xlane.f32.xlu0 %v342
    %v344 = vpop.xlane.xlu0 %343
    %v345 = vsel %vm209, %v341, 0.0
    %346 = vadd.xlane.f32.xlu0 %v345
    %v347 = vpop.xlane.xlu0 %346
    %v348 = vrcp.pop %v344
    %v349 = vrcp.pop %v347
    %v350 = vmul.f32 %v339, %v348
    %v351 = vmul.f32 %v341, %v349
    %v352 = vpack.c.bf16 %v351, %v350
    %354 = vrot.lane.b32.xlu0 %v159, 96
    %v355 = vpop.permute.xlu0 %354
    %v358 = vsel %vm209, %v352, 0
    %360 = vmatprep.subr.bf16.mxu0 0
    %361 = vmatpush1.bf16.msra.mxu0 %v355
    %362 = vmatprep.subr.bf16.mxu0 0
    %363 = vmatpush1.bf16.msra.mxu0 0
    %364 = vmatprep.subr.bf16.mxu0 0
    %365 = vmatpush1.bf16.msra.mxu0 0
    %366 = vmatprep.subr.bf16.mxu0 0
    %367 = vmatpush1.bf16.msra.mxu0 0
    %368 = vmatprep.subr.bf16.mxu0 0
    %369 = vmatpush1.bf16.msra.mxu0 0
    %370 = vmatprep.subr.bf16.mxu0 0
    %371 = vmatpush1.bf16.msra.mxu0 0
    %372 = vmatprep.subr.bf16.mxu0 0
    %373 = vmatpush1.bf16.msra.mxu0 0
    %374 = vmatprep.subr.bf16.mxu0 0
    %375 = vmatpush1.bf16.msra.mxu0 0
    %376 = vmatprep.subr.bf16.mxu0 0
    %377 = vmatpush1.bf16.msra.mxu0 0
    %378 = vmatprep.subr.bf16.mxu0 0
    %379 = vmatpush1.bf16.msra.mxu0 0
    %380 = vmatprep.subr.bf16.mxu0 0
    %381 = vmatpush1.bf16.msra.mxu0 0
    %382 = vmatprep.subr.bf16.mxu0 0
    %383 = vmatpush1.bf16.msra.mxu0 0
    %384 = vmatprep.subr.bf16.mxu0 0
    %385 = vmatpush1.bf16.msra.mxu0 0
    %386 = vmatprep.subr.bf16.mxu0 0
    %387 = vmatpush1.bf16.msra.mxu0 0
    %388 = vmatprep.subr.bf16.mxu0 0
    %389 = vmatpush1.bf16.msra.mxu0 0
    %390 = vmatprep.subr.bf16.mxu0 0
    %391 = vmatpush1.bf16.msra.mxu0 0
    %392 = vmatprep.mubr.bf16.mxu0 0
    %393 = vmatmul.mubr.bf16.gmra.mrb[0].mxu0 %v358
    %v394 = vpop.f32.mrb[0].mxu0
    %v395 = vadd.f32 0.0, %v394
    %v396 = vpop.f32.mrb[0].mxu0
    %v397 = vpop.f32.mrb[0].mxu0
    %v398 = vadd.f32 0.0, %v397
    %v399 = vpop.f32.mrb[0].mxu0
    %400 = vdwg.mxu0
    %401 = vrot.lane.b32.xlu0 %v157, 64
    %v402 = vpop.permute.xlu0 %401
    %403 = vrot.lane.b32.xlu0 %v158, 64
    %v404 = vpop.permute.xlu0 %403
    %v406 = vsel %vm69, %v402, 0
    %v409 = vsel %vm69, %v404, 0
    %411 = vmatprep.subr.bf16.mxu0 0
    %412 = vmatpush1.bf16.xpose.msra.mxu0 %v409
    %413 = vmatprep.subr.bf16.mxu0 0
    %414 = vmatpush1.bf16.xpose.msra.mxu0 0
    %415 = vmatprep.subr.bf16.mxu0 0
    %416 = vmatpush1.bf16.xpose.msra.mxu0 0
    %417 = vmatprep.subr.bf16.mxu0 0
    %418 = vmatpush1.bf16.xpose.msra.mxu0 0
    %419 = vmatprep.subr.bf16.mxu0 0
    %420 = vmatpush1.bf16.xpose.msra.mxu0 0
    %421 = vmatprep.subr.bf16.mxu0 0
    %422 = vmatpush1.bf16.xpose.msra.mxu0 0
    %423 = vmatprep.subr.bf16.mxu0 0
    %424 = vmatpush1.bf16.xpose.msra.mxu0 0
    %425 = vmatprep.subr.bf16.mxu0 0
    %426 = vmatpush1.bf16.xpose.msra.mxu0 0
    %427 = vmatprep.subr.bf16.mxu0 0
    %428 = vmatpush1.bf16.xpose.msra.mxu0 0
    %429 = vmatprep.subr.bf16.mxu0 0
    %430 = vmatpush1.bf16.xpose.msra.mxu0 0
    %431 = vmatprep.subr.bf16.mxu0 0
    %432 = vmatpush1.bf16.xpose.msra.mxu0 0
    %433 = vmatprep.subr.bf16.mxu0 0
    %434 = vmatpush1.bf16.xpose.msra.mxu0 0
    %435 = vmatprep.subr.bf16.mxu0 0
    %436 = vmatpush1.bf16.xpose.msra.mxu0 0
    %437 = vmatprep.subr.bf16.mxu0 0
    %438 = vmatpush1.bf16.xpose.msra.mxu0 0
    %439 = vmatprep.subr.bf16.mxu0 0
    %440 = vmatpush1.bf16.xpose.msra.mxu0 0
    %441 = vmatprep.subr.bf16.mxu0 0
    %442 = vmatpush1.bf16.xpose.msra.mxu0 0
    %443 = vmatprep.mubr.bf16.mxu0 0
    %444 = vmatmul.mubr.bf16.gmra.mrb[0].mxu0 %v406
    %v445 = vpop.f32.mrb[0].mxu0
    %v446 = vadd.f32 %v160, %v445
    %v447 = vpop.f32.mrb[0].mxu0
    %v448 = vpop.f32.mrb[0].mxu0
    %v449 = vadd.f32 %v161, %v448
    %v450 = vpop.f32.mrb[0].mxu0
    %451 = vdwg.mxu0
    %v452 = vsel %vm209, %v446, -inf
    %453 = vmax.xlane.f32.xlu0 %v452
    %v454 = vpop.xlane.xlu0 %453
    %v455 = vsel %vm209, %v449, -inf
    %456 = vmax.xlane.f32.xlu0 %v455
    %v457 = vpop.xlane.xlu0 %456
    %v458 = vsub.f32 %v446, %v454
    %v459 = vsub.f32 %v449, %v457
    %v460 = vmul.f32 %v458, 1.442695
    %v461 = vpow.pop %v460
    %v462 = vmul.f32 %v459, 1.442695
    %v463 = vpow.pop %v462
    %v464 = vsel %vm209, %v461, 0.0
    %465 = vadd.xlane.f32.xlu0 %v464
    %v466 = vpop.xlane.xlu0 %465
    %v467 = vsel %vm209, %v463, 0.0
    %468 = vadd.xlane.f32.xlu0 %v467
    %v469 = vpop.xlane.xlu0 %468
    %v470 = vrcp.pop %v466
    %v471 = vrcp.pop %v469
    %v472 = vmul.f32 %v461, %v470
    %v473 = vmul.f32 %v463, %v471
    %v474 = vpack.c.bf16 %v473, %v472
    %475 = vrot.lane.b32.xlu0 %v159, 64
    %v476 = vpop.permute.xlu0 %475
    %v479 = vsel %vm209, %v474, 0
    %481 = vmatprep.subr.bf16.mxu0 0
    %482 = vmatpush1.bf16.msra.mxu0 %v476
    %483 = vmatprep.subr.bf16.mxu0 0
    %484 = vmatpush1.bf16.msra.mxu0 0
    %485 = vmatprep.subr.bf16.mxu0 0
    %486 = vmatpush1.bf16.msra.mxu0 0
    %487 = vmatprep.subr.bf16.mxu0 0
    %488 = vmatpush1.bf16.msra.mxu0 0
    %489 = vmatprep.subr.bf16.mxu0 0
    %490 = vmatpush1.bf16.msra.mxu0 0
    %491 = vmatprep.subr.bf16.mxu0 0
    %492 = vmatpush1.bf16.msra.mxu0 0
    %493 = vmatprep.subr.bf16.mxu0 0
    %494 = vmatpush1.bf16.msra.mxu0 0
    %495 = vmatprep.subr.bf16.mxu0 0
    %496 = vmatpush1.bf16.msra.mxu0 0
    %497 = vmatprep.subr.bf16.mxu0 0
    %498 = vmatpush1.bf16.msra.mxu0 0
    %499 = vmatprep.subr.bf16.mxu0 0
    %500 = vmatpush1.bf16.msra.mxu0 0
    %501 = vmatprep.subr.bf16.mxu0 0
    %502 = vmatpush1.bf16.msra.mxu0 0
    %503 = vmatprep.subr.bf16.mxu0 0
    %504 = vmatpush1.bf16.msra.mxu0 0
    %505 = vmatprep.subr.bf16.mxu0 0
    %506 = vmatpush1.bf16.msra.mxu0 0
    %507 = vmatprep.subr.bf16.mxu0 0
    %508 = vmatpush1.bf16.msra.mxu0 0
    %509 = vmatprep.subr.bf16.mxu0 0
    %510 = vmatpush1.bf16.msra.mxu0 0
    %511 = vmatprep.subr.bf16.mxu0 0
    %512 = vmatpush1.bf16.msra.mxu0 0
    %513 = vmatprep.mubr.bf16.mxu0 0
    %514 = vmatmul.mubr.bf16.gmra.mrb[0].mxu0 %v479
    %v515 = vpop.f32.mrb[0].mxu0
    %v516 = vadd.f32 0.0, %v515
    %v517 = vpop.f32.mrb[0].mxu0
    %v518 = vpop.f32.mrb[0].mxu0
    %v519 = vadd.f32 0.0, %v518
    %v520 = vpop.f32.mrb[0].mxu0
    %521 = vdwg.mxu0
    %522 = vrot.lane.b32.xlu0 %v157, 32
    %v523 = vpop.permute.xlu0 %522
    %524 = vrot.lane.b32.xlu0 %v158, 32
    %v525 = vpop.permute.xlu0 %524
    %v527 = vsel %vm69, %v523, 0
    %v530 = vsel %vm69, %v525, 0
    %532 = vmatprep.subr.bf16.mxu0 0
    %533 = vmatpush1.bf16.xpose.msra.mxu0 %v530
    %534 = vmatprep.subr.bf16.mxu0 0
    %535 = vmatpush1.bf16.xpose.msra.mxu0 0
    %536 = vmatprep.subr.bf16.mxu0 0
    %537 = vmatpush1.bf16.xpose.msra.mxu0 0
    %538 = vmatprep.subr.bf16.mxu0 0
    %539 = vmatpush1.bf16.xpose.msra.mxu0 0
    %540 = vmatprep.subr.bf16.mxu0 0
    %541 = vmatpush1.bf16.xpose.msra.mxu0 0
    %542 = vmatprep.subr.bf16.mxu0 0
    %543 = vmatpush1.bf16.xpose.msra.mxu0 0
    %544 = vmatprep.subr.bf16.mxu0 0
    %545 = vmatpush1.bf16.xpose.msra.mxu0 0
    %546 = vmatprep.subr.bf16.mxu0 0
    %547 = vmatpush1.bf16.xpose.msra.mxu0 0
    %548 = vmatprep.subr.bf16.mxu0 0
    %549 = vmatpush1.bf16.xpose.msra.mxu0 0
    %550 = vmatprep.subr.bf16.mxu0 0
    %551 = vmatpush1.bf16.xpose.msra.mxu0 0
    %552 = vmatprep.subr.bf16.mxu0 0
    %553 = vmatpush1.bf16.xpose.msra.mxu0 0
    %554 = vmatprep.subr.bf16.mxu0 0
    %555 = vmatpush1.bf16.xpose.msra.mxu0 0
    %556 = vmatprep.subr.bf16.mxu0 0
    %557 = vmatpush1.bf16.xpose.msra.mxu0 0
    %558 = vmatprep.subr.bf16.mxu0 0
    %559 = vmatpush1.bf16.xpose.msra.mxu0 0
    %560 = vmatprep.subr.bf16.mxu0 0
    %561 = vmatpush1.bf16.xpose.msra.mxu0 0
    %562 = vmatprep.subr.bf16.mxu0 0
    %563 = vmatpush1.bf16.xpose.msra.mxu0 0
    %564 = vmatprep.mubr.bf16.mxu0 0
    %565 = vmatmul.mubr.bf16.gmra.mrb[0].mxu0 %v527
    %v566 = vpop.f32.mrb[0].mxu0
    %v567 = vadd.f32 %v160, %v566
    %v568 = vpop.f32.mrb[0].mxu0
    %v569 = vpop.f32.mrb[0].mxu0
    %v570 = vadd.f32 %v161, %v569
    %v571 = vpop.f32.mrb[0].mxu0
    %572 = vdwg.mxu0
    %v573 = vsel %vm209, %v567, -inf
    %574 = vmax.xlane.f32.xlu0 %v573
    %v575 = vpop.xlane.xlu0 %574
    %v576 = vsel %vm209, %v570, -inf
    %577 = vmax.xlane.f32.xlu0 %v576
    %v578 = vpop.xlane.xlu0 %577
    %v579 = vsub.f32 %v567, %v575
    %v580 = vsub.f32 %v570, %v578
    %v581 = vmul.f32 %v579, 1.442695
    %v582 = vpow.pop %v581
    %v583 = vmul.f32 %v580, 1.442695
    %v584 = vpow.pop %v583
    %v585 = vsel %vm209, %v582, 0.0
    %586 = vadd.xlane.f32.xlu0 %v585
    %v587 = vpop.xlane.xlu0 %586
    %v588 = vsel %vm209, %v584, 0.0
    %589 = vadd.xlane.f32.xlu0 %v588
    %v590 = vpop.xlane.xlu0 %589
    %v591 = vrcp.pop %v587
    %v592 = vrcp.pop %v590
    %v593 = vmul.f32 %v582, %v591
    %v594 = vmul.f32 %v584, %v592
    %v595 = vpack.c.bf16 %v594, %v593
    %596 = vrot.lane.b32.xlu0 %v159, 32
    %v597 = vpop.permute.xlu0 %596
    %v600 = vsel %vm209, %v595, 0
    %602 = vmatprep.subr.bf16.mxu0 0
    %603 = vmatpush1.bf16.msra.mxu0 %v597
    %604 = vmatprep.subr.bf16.mxu0 0
    %605 = vmatpush1.bf16.msra.mxu0 0
    %606 = vmatprep.subr.bf16.mxu0 0
    %607 = vmatpush1.bf16.msra.mxu0 0
    %608 = vmatprep.subr.bf16.mxu0 0
    %609 = vmatpush1.bf16.msra.mxu0 0
    %610 = vmatprep.subr.bf16.mxu0 0
    %611 = vmatpush1.bf16.msra.mxu0 0
    %612 = vmatprep.subr.bf16.mxu0 0
    %613 = vmatpush1.bf16.msra.mxu0 0
    %614 = vmatprep.subr.bf16.mxu0 0
    %615 = vmatpush1.bf16.msra.mxu0 0
    %616 = vmatprep.subr.bf16.mxu0 0
    %617 = vmatpush1.bf16.msra.mxu0 0
    %618 = vmatprep.subr.bf16.mxu0 0
    %619 = vmatpush1.bf16.msra.mxu0 0
    %620 = vmatprep.subr.bf16.mxu0 0
    %621 = vmatpush1.bf16.msra.mxu0 0
    %622 = vmatprep.subr.bf16.mxu0 0
    %623 = vmatpush1.bf16.msra.mxu0 0
    %624 = vmatprep.subr.bf16.mxu0 0
    %625 = vmatpush1.bf16.msra.mxu0 0
    %626 = vmatprep.subr.bf16.mxu0 0
    %627 = vmatpush1.bf16.msra.mxu0 0
    %628 = vmatprep.subr.bf16.mxu0 0
    %629 = vmatpush1.bf16.msra.mxu0 0
    %630 = vmatprep.subr.bf16.mxu0 0
    %631 = vmatpush1.bf16.msra.mxu0 0
    %632 = vmatprep.subr.bf16.mxu0 0
    %633 = vmatpush1.bf16.msra.mxu0 0
    %634 = vmatprep.mubr.bf16.mxu0 0
    %635 = vmatmul.mubr.bf16.gmra.mrb[0].mxu0 %v600
    %v636 = vpop.f32.mrb[0].mxu0
    %v637 = vadd.f32 0.0, %v636
    %v638 = vpop.f32.mrb[0].mxu0
    %v639 = vpop.f32.mrb[0].mxu0
    %v640 = vadd.f32 0.0, %v639
    %v641 = vpop.f32.mrb[0].mxu0
    %642 = vdwg.mxu0
    %645 = vrot.lane.b32.xlu0 %v395, 32
    %v646 = vpop.permute.xlu0 %645
    %647 = vrot.lane.b32.xlu0 %v398, 32
    %v648 = vpop.permute.xlu0 %647
    %653 = vrot.lane.b32.xlu0 %v516, 64
    %v654 = vpop.permute.xlu0 %653
    %655 = vrot.lane.b32.xlu0 %v519, 64
    %v656 = vpop.permute.xlu0 %655
    %661 = vrot.lane.b32.xlu0 %v637, 96
    %v662 = vpop.permute.xlu0 %661
    %663 = vrot.lane.b32.xlu0 %v640, 96
    %v664 = vpop.permute.xlu0 %663
    %v667 = vsel %vm69, %v271, %v646
    %v668 = vsel %vm69, %v274, %v648
    %vm669 = vcmask 523264
    %v670 = vsel %vm669, %v667, %v654
    %v671 = vsel %vm669, %v668, %v656
    %vm672 = vcmask 785408
    %v673 = vsel %vm672, %v670, %v662
    %v674 = vsel %vm672, %v671, %v664
    %v675 = vpack.c.bf16 %v674, %v673
    %v676 = vld [vmem:[%s2] sm:$0xf]
    %v677 = vld [vmem:[%s2 + $0x4] sm:$0xf]
    %v678 = vld [vmem:[%s2 + $0x8] sm:$0xf]
    %v679 = vld [vmem:[%s2 + $0xc] sm:$0xf]
    %v680 = vld [vmem:[%s2 + $0x10] sm:$0xf]
    %v681 = vld [vmem:[%s2 + $0x14] sm:$0xf]
    %v682 = vld [vmem:[%s2 + $0x18] sm:$0xf]
    %v683 = vld [vmem:[%s2 + $0x1c] sm:$0xf]
    %v684 = vld [vmem:[%s2 + $0x20] sm:$0xf]
    %v685 = vld [vmem:[%s2 + $0x24] sm:$0xf]
    %v686 = vld [vmem:[%s2 + $0x28] sm:$0xf]
    %v687 = vld [vmem:[%s2 + $0x2c] sm:$0xf]
    %v688 = vld [vmem:[%s2 + $0x30] sm:$0xf]
    %v689 = vld [vmem:[%s2 + $0x34] sm:$0xf]
    %v690 = vld [vmem:[%s2 + $0x38] sm:$0xf]
    %v691 = vld [vmem:[%s2 + $0x3c] sm:$0xf]
    %v692 = vld [vmem:[%s3] sm:$0x1]
    %v694 = vlaneseq
    %v695 = vshrl.u32 %v694, 7
    %v696 = vsub.s32 0, %v695
    %v697 = vrot.slane %v692, %v696
    %v715 = vunpack.c.l.b16 %v676
    %v716 = vunpack.c.l.b16 %v677
    %v717 = vunpack.c.l.b16 %v678
    %v718 = vunpack.c.l.b16 %v679
    %v719 = vunpack.c.l.b16 %v680
    %v720 = vunpack.c.l.b16 %v681
    %v721 = vunpack.c.l.b16 %v682
    %v722 = vunpack.c.l.b16 %v683
    %v723 = vunpack.c.l.b16 %v684
    %v724 = vunpack.c.l.b16 %v685
    %v725 = vunpack.c.l.b16 %v686
    %v726 = vunpack.c.l.b16 %v687
    %v727 = vunpack.c.l.b16 %v688
    %v728 = vunpack.c.l.b16 %v689
    %v729 = vunpack.c.l.b16 %v690
    %v730 = vunpack.c.l.b16 %v691
    %v731 = vpack.c.b16 %v716, %v715
    %v732 = vpack.c.b16 %v718, %v717
    %v733 = vpack.c.b16 %v720, %v719
    %v734 = vpack.c.b16 %v722, %v721
    %v735 = vpack.c.b16 %v724, %v723
    %v736 = vpack.c.b16 %v726, %v725
    %v737 = vpack.c.b16 %v728, %v727
    %v738 = vpack.c.b16 %v730, %v729
    %747 = vmatprep.subr.bf16.mxu0 0
    %748 = vmatpush1.bf16.msra.mxu0 %v731
    %749 = vmatprep.subr.bf16.mxu0 0
    %750 = vmatpush1.bf16.msra.mxu0 %v732
    %751 = vmatprep.subr.bf16.mxu0 0
    %752 = vmatpush1.bf16.msra.mxu0 %v733
    %753 = vmatprep.subr.bf16.mxu0 0
    %754 = vmatpush1.bf16.msra.mxu0 %v734
    %755 = vmatprep.subr.bf16.mxu0 0
    %756 = vmatpush1.bf16.msra.mxu0 %v735
    %757 = vmatprep.subr.bf16.mxu0 0
    %758 = vmatpush1.bf16.msra.mxu0 %v736
    %759 = vmatprep.subr.bf16.mxu0 0
    %760 = vmatpush1.bf16.msra.mxu0 %v737
    %761 = vmatprep.subr.bf16.mxu0 0
    %762 = vmatpush1.bf16.msra.mxu0 %v738
    %763 = vmatprep.subr.bf16.mxu0 0
    %764 = vmatpush1.bf16.msra.mxu0 0
    %765 = vmatprep.subr.bf16.mxu0 0
    %766 = vmatpush1.bf16.msra.mxu0 0
    %767 = vmatprep.subr.bf16.mxu0 0
    %768 = vmatpush1.bf16.msra.mxu0 0
    %769 = vmatprep.subr.bf16.mxu0 0
    %770 = vmatpush1.bf16.msra.mxu0 0
    %771 = vmatprep.subr.bf16.mxu0 0
    %772 = vmatpush1.bf16.msra.mxu0 0
    %773 = vmatprep.subr.bf16.mxu0 0
    %774 = vmatpush1.bf16.msra.mxu0 0
    %775 = vmatprep.subr.bf16.mxu0 0
    %776 = vmatpush1.bf16.msra.mxu0 0
    %777 = vmatprep.subr.bf16.mxu0 0
    %778 = vmatpush1.bf16.msra.mxu0 0
    %779 = vmatprep.mubr.bf16.mxu0 0
    %780 = vmatmul.mubr.bf16.gmra.mrb[0].mxu0 %v675
    %v781 = vpop.f32.mrb[0].mxu0
    %v782 = vadd.f32 %v697, %v781
    %v783 = vpop.f32.mrb[0].mxu0
    %v784 = vpop.f32.mrb[0].mxu0
    %v785 = vadd.f32 %v697, %v784
    %v786 = vpop.f32.mrb[0].mxu0
    %787 = vdwg.mxu0
    %788 = vst.msk [vmem:[#allocation2] sm:$0xff] %vm69, %v782
    %789 = vst.msk [vmem:[#allocation2 + $0x8] sm:$0xff] %vm69, %v785
    // Predicated region
    $region22: #{tpu_custom_call.1} parent=1 // pred_check
      _
    $region23: #{tpu_custom_call.1} parent=1 // pred_check_branch
      %791 = sbr.rel (0) target = $region25
    $region24: #{tpu_custom_call.1} parent=1 // pred_region
      %s793 = ssub.s32 256, 256
      %794 = vsyncadd [#allocation3], %s793
      %s795 = sshll.u32 [#allocation2], 4
      %s796 = int_to_ptr.vmem [resolvable:$true] %s795
      %801 = dma.vmem_to_hbm [thread:$0]  %s796, 256, %s5, [#allocation3], 128, 128, 8
    $region25: #{tpu_custom_call.1} parent=1 // pred_fallthru
      _
    // Predicated region
    $region26: #{tpu_custom_call.1} parent=1 // pred_check
      _
    $region27: #{tpu_custom_call.1} parent=1 // pred_check_branch
      %803 = sbr.rel (0) target = $region29
    $region28: #{tpu_custom_call.1} parent=1 // pred_region
      %804 = dma.done [#allocation3], 256
    $region29: #{tpu_custom_call.1} parent=1 // pred_fallthru
      _
    %805 = vsyncpa [#allocation3], 1

</llo_original>
